<compile_context>
chip_gen: v7x
topology: tpu7x:2x2x1
jax: 0.10.0
libtpu: 0.0.40
codegen_flags: <defaults>
</compile_context>

<pallas_src>
import functools

import jax
import jax.numpy as jnp
from jax import lax
from jax.experimental import pallas as pl
from jax.experimental.pallas import tpu as pltpu


# ---------------------------------------------------------------------------
# Path 1: small tables -- table resident in VMEM, one-hot gather on the MXU.
# ---------------------------------------------------------------------------
def _onehot_gather_kernel(ids_ref, emb_ref, out_ref, *, scale):
    # ids_ref: VMEM int32 (T, 1); emb_ref: VMEM (vocab, d); out_ref: (T, d).
    tokens = ids_ref.shape[0]
    vocab = emb_ref.shape[0]
    one_hot = (
        ids_ref[...] == lax.broadcasted_iota(jnp.int32, (tokens, vocab), 1)
    ).astype(emb_ref.dtype)
    rows = jnp.dot(one_hot, emb_ref[...], preferred_element_type=jnp.float32)
    out_ref[...] = (rows * scale).astype(out_ref.dtype)


def _embed_vmem_resident(ids_pad, table, *, tokens_per_step, scale, n_steps):
    vocab, d = table.shape
    t = tokens_per_step
    grid_spec = pltpu.PrefetchScalarGridSpec(
        num_scalar_prefetch=0,
        grid=(n_steps,),
        in_specs=[
            pl.BlockSpec((t, 1), lambda i: (i, 0)),      # this step's ids
            pl.BlockSpec((vocab, d), lambda i: (0, 0)),  # table: resident
        ],
        out_specs=pl.BlockSpec((t, d), lambda i: (i, 0)),
    )
    return pl.pallas_call(
        functools.partial(_onehot_gather_kernel, scale=scale),
        out_shape=jax.ShapeDtypeStruct((n_steps * t, d), table.dtype),
        grid_spec=grid_spec,
        compiler_params=pltpu.CompilerParams(
            dimension_semantics=("parallel",),
            vmem_limit_bytes=32 * 1024 * 1024,
        ),
    )(ids_pad.reshape(-1, 1), table)


# ---------------------------------------------------------------------------
# Path 2: large tables -- table in HBM, deep issue-ahead row-DMA gather.
# ---------------------------------------------------------------------------
def _hbm_gather_kernel(ids_ref, emb_hbm, out_ref, sem, *, tokens_per_step,
                       scale, n_valid):
    # ids_ref: SMEM int32[n_padded] (scalar prefetch); emb_hbm: HBM [vocab, d]
    # out_ref: VMEM (T, d) output tile; sem: one shared DMA semaphore.
    t = tokens_per_step
    base = pl.program_id(0) * t

    def row_copy(r):
        tok = ids_ref[base + r]
        return pltpu.make_async_copy(
            emb_hbm.at[pl.ds(tok, 1)],   # one (1, d) row in HBM
            out_ref.at[pl.ds(r, 1)],     # straight into the output tile
            sem.at[0],
        )

    def issue(r, carry):
        @pl.when(base + r < n_valid)     # skip padded tail rows entirely
        def _():
            row_copy(r).start()
        return carry

    def drain(r, carry):
        @pl.when(base + r < n_valid)
        def _():
            # Identical descriptor (same tok / dst / sem) as the start above.
            row_copy(r).wait()
        return carry

    # Deep issue-ahead: put ALL T row DMAs in flight before the first wait so
    # ~T * row_bytes of HBM traffic is outstanding (hides HBM latency), then
    # drain them all on the shared semaphore (equal-sized copies, so the
    # byte-count accounting is exact once every guarded wait has returned).
    lax.fori_loop(0, t, issue, 0)
    lax.fori_loop(0, t, drain, 0)

    # One dense in-place scale of the gathered tile: a single unmasked,
    # lane-dense store; the VPU multiply is free under the memory bound.
    # (Scale stays in-kernel so the stored table keeps nn.Embedding's
    #  unscaled parameter values.)
    out_ref[...] = out_ref[...] * scale


def _embed_hbm_gather(ids_pad, table, *, tokens_per_step, scale, n_steps,
                      n_valid):
    _, d = table.shape
    t = tokens_per_step
    grid_spec = pltpu.PrefetchScalarGridSpec(
        num_scalar_prefetch=1,                          # ids -> SMEM
        grid=(n_steps,),
        in_specs=[pl.BlockSpec(memory_space=pl.ANY)],   # table stays in HBM
        out_specs=pl.BlockSpec((t, d), lambda i, ids: (i, 0)),
        scratch_shapes=[pltpu.SemaphoreType.DMA((1,))],
    )
    return pl.pallas_call(
        functools.partial(_hbm_gather_kernel, tokens_per_step=t, scale=scale,
                          n_valid=n_valid),
        out_shape=jax.ShapeDtypeStruct((n_steps * t, d), table.dtype),
        grid_spec=grid_spec,
        compiler_params=pltpu.CompilerParams(
            dimension_semantics=("parallel",),
            vmem_limit_bytes=32 * 1024 * 1024,
        ),
    )(ids_pad, table)


# ---------------------------------------------------------------------------
# Wrapper: dispatch, tiling, padding, chunking.
# ---------------------------------------------------------------------------
def scaled_embedding(ids, emb_table, *, tokens_per_step=256,
                     max_tokens_per_call=32768, force_hbm_gather=False):
    """Embedding lookup scaled by sqrt(d_model).

    ids: int array of any shape; emb_table: [vocab, d_model].
    Returns ids.shape + (d_model,) in emb_table.dtype.
    """
    vocab, d_model = emb_table.shape
    scale = float(d_model) ** 0.5
    itemsize = emb_table.dtype.itemsize
    lead_shape = ids.shape

    # Keep the output store lane-dense: pad d_model up to a multiple of 128.
    d_pad = ((d_model + 127) // 128) * 128
    table = emb_table if d_pad == d_model else jnp.pad(
        emb_table, ((0, 0), (0, d_pad - d_model)))

    # Clamp ids so a bad token can never trigger an out-of-bounds HBM DMA.
    # TODO(synk): PyTorch raises on out-of-range ids; here they are clamped.
    flat_ids = jnp.clip(ids.reshape(-1).astype(jnp.int32), 0, vocab - 1)
    n_tokens = flat_ids.shape[0]

    # Small tables: keep the table VMEM-resident and gather with the MXU.
    table_bytes = vocab * d_pad * itemsize
    use_vmem_path = (not force_hbm_gather
                     and table_bytes <= (2 << 20) and vocab <= 2048)

    # Rows per grid step: as large as possible while the double-buffered
    # (T, d_pad) output tile (+ resident table on the fast path) stays under a
    # 24 MiB VMEM budget -- safe for v7x's 64 MiB VMEM / 32 MiB scoped default.
    vmem_budget = 24 * 1024 * 1024
    avail = vmem_budget - (2 * table_bytes if use_vmem_path else 0)
    t_cap = max(8, (avail // (2 * d_pad * itemsize) // 8) * 8)
    tile_t = int(max(8, min((tokens_per_step // 8) * 8, t_cap)))

    # Chunk calls so at most ~max_tokens_per_call ids are scalar-prefetched
    # into SMEM per pallas_call (1-D SMEM arrays pad to next_pow2(4N) bytes).
    chunk = max(tile_t, (max_tokens_per_call // tile_t) * tile_t)

    pieces = []
    for start in range(0, n_tokens, chunk):
        ids_c = flat_ids[start:min(start + chunk, n_tokens)]
        n_valid = ids_c.shape[0]
        n_steps = pl.cdiv(n_valid, tile_t)
        n_padded = n_steps * tile_t
        if n_padded != n_valid:
            ids_c = jnp.pad(ids_c, (0, n_padded - n_valid))
        if use_vmem_path:
            out_c = _embed_vmem_resident(ids_c, table, tokens_per_step=tile_t,
                                         scale=scale, n_steps=n_steps)
        else:
            out_c = _embed_hbm_gather(ids_c, table, tokens_per_step=tile_t,
                                      scale=scale, n_steps=n_steps,
                                      n_valid=n_valid)
        pieces.append(out_c[:n_valid])

    out = pieces[0] if len(pieces) == 1 else jnp.concatenate(pieces, axis=0)
    if d_pad != d_model:
        out = out[:, :d_model]
    return out.reshape(*lead_shape, d_model)


def init_embedding_table(key, vocab_size, d_model, padding_idx):
    # nn.Embedding default init: N(0, 1); the padding_idx row is zeroed.
    # TODO(synk): training-time gradient masking of padding_idx is not
    # represented here (forward-only semantics).
    w = jax.random.normal(key, (vocab_size, d_model), dtype=jnp.float32)
    return w.at[padding_idx].set(0.0)


if __name__ == "__main__":
    vocab_size = 64
    d_model = 128
    padding_idx = 0
    B, S = 2, 8

    key = jax.random.PRNGKey(0)
    k_emb, k_ids = jax.random.split(key)

    emb_table = init_embedding_table(k_emb, vocab_size, d_model, padding_idx)
    ids = jax.random.randint(k_ids, (B, S), 0, vocab_size, dtype=jnp.int32)
    # Force a couple of padding tokens to exercise the padding_idx semantics.
    ids = ids.at[0, 0].set(padding_idx)
    ids = ids.at[1, 3].set(padding_idx)

    # Reference in plain JAX (same semantics as the PyTorch module).
    ref = emb_table[ids] * (d_model ** 0.5)

    # Auto dispatch: the 64 x 128 f32 table (32 KiB) takes the VMEM-resident
    # one-hot MXU path.
    out_fast = jax.block_until_ready(scaled_embedding(ids, emb_table))
    # Also exercise the HBM manual-DMA gather path (used for large tables).
    out_hbm = jax.block_until_ready(
        scaled_embedding(ids, emb_table, force_hbm_gather=True))

    for out in (out_fast, out_hbm):
        assert out.shape == (B, S, d_model)
        assert jnp.allclose(out, ref, atol=1e-5, rtol=1e-5)
        assert jnp.all(out[0, 0] == 0.0) and jnp.all(out[1, 3] == 0.0)

    print("KERNEL_OK")
</pallas_src>

<mosaic_0001>
module attributes {stable_mosaic.version = 11 : i64} {
  func.func @_onehot_gather_kernel(%arg0: i32, %arg1: memref<256x1xi32, #tpu.memory_space<vmem>>, %arg2: memref<64x128xf32, #tpu.memory_space<vmem>>, %arg3: memref<256x128xf32, #tpu.memory_space<vmem>>) attributes {dimension_semantics = [#tpu.dimension_semantics<parallel>], iteration_bounds = array<i64: 1>, scalar_prefetch = 0 : i64, scratch_operands = 0 : i64, tpu.core_type = #tpu.core_type<tc>, window_params = [{transform_indices = @transform_0, window_bounds = array<i64: 256, 1>}, {pipeline_mode = #tpu.pipeline_mode<synchronous>, transform_indices = @transform_1, window_bounds = array<i64: 64, 128>}, {transform_indices = @transform_2, window_bounds = array<i64: 256, 128>}]} {
    %c0 = arith.constant 0 : index
    %c0_0 = arith.constant 0 : index
    %0 = vector.load %arg1[%c0, %c0_0] : memref<256x1xi32, #tpu.memory_space<vmem>>, vector<256x1xi32>
    %1 = tpu.iota {dimensions = array<i32: 1>} : vector<256x64xi32>
    %2 = vector.broadcast %0 : vector<256x1xi32> to vector<256x64xi32>
    %3 = arith.cmpi eq, %2, %1 : vector<256x64xi32>
    %4 = arith.extui %3 : vector<256x64xi1> to vector<256x64xi32>
    %5 = arith.sitofp %4 : vector<256x64xi32> to vector<256x64xf32>
    %c0_1 = arith.constant 0 : index
    %c0_2 = arith.constant 0 : index
    %6 = vector.load %arg2[%c0_1, %c0_2] : memref<64x128xf32, #tpu.memory_space<vmem>>, vector<64x128xf32>
    %cst = arith.constant dense<0.000000e+00> : vector<256x128xf32>
    %7 = tpu.matmul %5, %6, %cst {dimension_numbers = #tpu.dot_dimension_numbers<[1], [0], [0], [1], [0, 0, 1, 1], [], []>} : vector<256x64xf32>, vector<64x128xf32>, vector<256x128xf32> -> vector<256x128xf32>
    %cst_3 = arith.constant 11.3137083 : f32
    %8 = vector.broadcast %cst_3 : f32 to vector<256x128xf32>
    %9 = arith.mulf %7, %8 : vector<256x128xf32>
    %c0_4 = arith.constant 0 : index
    %c0_5 = arith.constant 0 : index
    %10 = vector.load %arg3[%c0_4, %c0_5] : memref<256x128xf32, #tpu.memory_space<vmem>>, vector<256x128xf32>
    tpu.vector_store %arg3[%c0_4, %c0_5], %9 {strides = array<i32>} : memref<256x128xf32, #tpu.memory_space<vmem>>, vector<256x128xf32>,
    return
  }
  func.func @transform_0(%arg0: i32) -> (i32, i32) {
    %c0_i32 = arith.constant 0 : i32
    %c0_i32_0 = arith.constant 0 : i32
    return %arg0, %c0_i32 : i32, i32
  }
  func.func @transform_1(%arg0: i32) -> (i32, i32) {
    %c0_i32 = arith.constant 0 : i32
    %c0_i32_0 = arith.constant 0 : i32
    %c0_i32_1 = arith.constant 0 : i32
    return %c0_i32, %c0_i32_0 : i32, i32
  }
  func.func @transform_2(%arg0: i32) -> (i32, i32) {
    %c0_i32 = arith.constant 0 : i32
    %c0_i32_0 = arith.constant 0 : i32
    return %arg0, %c0_i32 : i32, i32
  }
}

</mosaic_0001>

<llo_original>
// kernel: tpu_custom_call.1
$region0: #{tpu_custom_call.1}
  #allocation0 [shape = 'u32[]', space=smem, size = 0x4, offset = 0x4, fixed_abs, tag = 'smem constant byte address 0x4 - core index']
  #allocation1 [shape = 'u32[144,128]{1,0:T(1,128)}', space=vmem, size = 0x12000, scoped, tag = 'internal scratch']
  %s0 = inlined_call_operand.vmem [shape: s32[256,1], index: 0, kind: input, shape index: {}]
  %s1 = inlined_call_operand.vmem [shape: f32[64,128], index: 1, kind: input, shape index: {}]
  %s2 = inlined_call_operand.hbm [shape: f32[256,128], index: 2, kind: output, shape index: {}]
  %s3 = sld [smem:[#allocation0]]
  $region18: #{tpu_custom_call.1} parent=0
    _
  %s5 = ssub.s32 1, %s3
  %s6 = scalar_select 0, %s5, %s3
  $region1: #{tpu_custom_call.1} parent=0
    #allocation2 [shape = 'u8[131072]{0}', space=vmem, size = 0x20000, scoped, tag = 'output window, operand 0, single buffered']
    #allocation3 [shape = 's32[1]{0}', space=sflag, size = 0x4, scoped, tag = 'scoped memory for tpu_custom_call.1']
    %7 = vsyncpa [#allocation3], 0
    // Predicated region
    $region2: #{tpu_custom_call.1} parent=1 // pred_check
      _
    $region3: #{tpu_custom_call.1} parent=1 // pred_check_branch
      %9 = sbr.rel (0) target = $region5
    $region4: #{tpu_custom_call.1} parent=1 // pred_region
      _
    $region5: #{tpu_custom_call.1} parent=1 // pred_fallthru
      _
    // Predicated region
    $region6: #{tpu_custom_call.1} parent=1 // pred_check
      _
    $region7: #{tpu_custom_call.1} parent=1 // pred_check_branch
      %11 = sbr.rel (0) target = $region9
    $region8: #{tpu_custom_call.1} parent=1 // pred_region
      _
    $region9: #{tpu_custom_call.1} parent=1 // pred_fallthru
      _
    %v12 = vld [vmem:[%s0] sm:$0xff]
    %v13 = vld [vmem:[%s0 + $0x8] sm:$0xff]
    %v14 = vld [vmem:[%s0 + $0x10] sm:$0xff]
    %v15 = vld [vmem:[%s0 + $0x18] sm:$0xff]
    %v16 = vld [vmem:[%s0 + $0x20] sm:$0xff]
    %v17 = vld [vmem:[%s0 + $0x28] sm:$0xff]
    %v18 = vld [vmem:[%s0 + $0x30] sm:$0xff]
    %v19 = vld [vmem:[%s0 + $0x38] sm:$0xff]
    %v20 = vld [vmem:[%s0 + $0x40] sm:$0xff]
    %v21 = vld [vmem:[%s0 + $0x48] sm:$0xff]
    %v22 = vld [vmem:[%s0 + $0x50] sm:$0xff]
    %v23 = vld [vmem:[%s0 + $0x58] sm:$0xff]
    %v24 = vld [vmem:[%s0 + $0x60] sm:$0xff]
    %v25 = vld [vmem:[%s0 + $0x68] sm:$0xff]
    %v26 = vld [vmem:[%s0 + $0x70] sm:$0xff]
    %v27 = vld [vmem:[%s0 + $0x78] sm:$0xff]
    %v28 = vld [vmem:[%s0 + $0x80] sm:$0xff]
    %v29 = vld [vmem:[%s0 + $0x88] sm:$0xff]
    %v30 = vld [vmem:[%s0 + $0x90] sm:$0xff]
    %v31 = vld [vmem:[%s0 + $0x98] sm:$0xff]
    %v32 = vld [vmem:[%s0 + $0xa0] sm:$0xff]
    %v33 = vld [vmem:[%s0 + $0xa8] sm:$0xff]
    %v34 = vld [vmem:[%s0 + $0xb0] sm:$0xff]
    %v35 = vld [vmem:[%s0 + $0xb8] sm:$0xff]
    %v36 = vld [vmem:[%s0 + $0xc0] sm:$0xff]
    %v37 = vld [vmem:[%s0 + $0xc8] sm:$0xff]
    %v38 = vld [vmem:[%s0 + $0xd0] sm:$0xff]
    %v39 = vld [vmem:[%s0 + $0xd8] sm:$0xff]
    %v40 = vld [vmem:[%s0 + $0xe0] sm:$0xff]
    %v41 = vld [vmem:[%s0 + $0xe8] sm:$0xff]
    %v42 = vld [vmem:[%s0 + $0xf0] sm:$0xff]
    %v43 = vld [vmem:[%s0 + $0xf8] sm:$0xff]
    %v44 = vlaneseq
    %v45 = vand.u32 %v44, 127
    %46 = vset.pattern.permute.xlu0 0
    %47 = vperm.xlu0 %46, %v12
    %v48 = vpop.permute.xlu0 %47
    %49 = vset.pattern.permute.xlu0 0
    %50 = vperm.xlu0 %49, %v13
    %v51 = vpop.permute.xlu0 %50
    %52 = vset.pattern.permute.xlu0 0
    %53 = vperm.xlu0 %52, %v14
    %v54 = vpop.permute.xlu0 %53
    %55 = vset.pattern.permute.xlu0 0
    %56 = vperm.xlu0 %55, %v15
    %v57 = vpop.permute.xlu0 %56
    %58 = vset.pattern.permute.xlu0 0
    %59 = vperm.xlu0 %58, %v16
    %v60 = vpop.permute.xlu0 %59
    %61 = vset.pattern.permute.xlu0 0
    %62 = vperm.xlu0 %61, %v17
    %v63 = vpop.permute.xlu0 %62
    %64 = vset.pattern.permute.xlu0 0
    %65 = vperm.xlu0 %64, %v18
    %v66 = vpop.permute.xlu0 %65
    %67 = vset.pattern.permute.xlu0 0
    %68 = vperm.xlu0 %67, %v19
    %v69 = vpop.permute.xlu0 %68
    %70 = vset.pattern.permute.xlu0 0
    %71 = vperm.xlu0 %70, %v20
    %v72 = vpop.permute.xlu0 %71
    %73 = vset.pattern.permute.xlu0 0
    %74 = vperm.xlu0 %73, %v21
    %v75 = vpop.permute.xlu0 %74
    %76 = vset.pattern.permute.xlu0 0
    %77 = vperm.xlu0 %76, %v22
    %v78 = vpop.permute.xlu0 %77
    %79 = vset.pattern.permute.xlu0 0
    %80 = vperm.xlu0 %79, %v23
    %v81 = vpop.permute.xlu0 %80
    %82 = vset.pattern.permute.xlu0 0
    %83 = vperm.xlu0 %82, %v24
    %v84 = vpop.permute.xlu0 %83
    %85 = vset.pattern.permute.xlu0 0
    %86 = vperm.xlu0 %85, %v25
    %v87 = vpop.permute.xlu0 %86
    %88 = vset.pattern.permute.xlu0 0
    %89 = vperm.xlu0 %88, %v26
    %v90 = vpop.permute.xlu0 %89
    %91 = vset.pattern.permute.xlu0 0
    %92 = vperm.xlu0 %91, %v27
    %v93 = vpop.permute.xlu0 %92
    %94 = vset.pattern.permute.xlu0 0
    %95 = vperm.xlu0 %94, %v28
    %v96 = vpop.permute.xlu0 %95
    %97 = vset.pattern.permute.xlu0 0
    %98 = vperm.xlu0 %97, %v29
    %v99 = vpop.permute.xlu0 %98
    %100 = vset.pattern.permute.xlu0 0
    %101 = vperm.xlu0 %100, %v30
    %v102 = vpop.permute.xlu0 %101
    %103 = vset.pattern.permute.xlu0 0
    %104 = vperm.xlu0 %103, %v31
    %v105 = vpop.permute.xlu0 %104
    %106 = vset.pattern.permute.xlu0 0
    %107 = vperm.xlu0 %106, %v32
    %v108 = vpop.permute.xlu0 %107
    %109 = vset.pattern.permute.xlu0 0
    %110 = vperm.xlu0 %109, %v33
    %v111 = vpop.permute.xlu0 %110
    %112 = vset.pattern.permute.xlu0 0
    %113 = vperm.xlu0 %112, %v34
    %v114 = vpop.permute.xlu0 %113
    %115 = vset.pattern.permute.xlu0 0
    %116 = vperm.xlu0 %115, %v35
    %v117 = vpop.permute.xlu0 %116
    %118 = vset.pattern.permute.xlu0 0
    %119 = vperm.xlu0 %118, %v36
    %v120 = vpop.permute.xlu0 %119
    %121 = vset.pattern.permute.xlu0 0
    %122 = vperm.xlu0 %121, %v37
    %v123 = vpop.permute.xlu0 %122
    %124 = vset.pattern.permute.xlu0 0
    %125 = vperm.xlu0 %124, %v38
    %v126 = vpop.permute.xlu0 %125
    %127 = vset.pattern.permute.xlu0 0
    %128 = vperm.xlu0 %127, %v39
    %v129 = vpop.permute.xlu0 %128
    %130 = vset.pattern.permute.xlu0 0
    %131 = vperm.xlu0 %130, %v40
    %v132 = vpop.permute.xlu0 %131
    %133 = vset.pattern.permute.xlu0 0
    %134 = vperm.xlu0 %133, %v41
    %v135 = vpop.permute.xlu0 %134
    %136 = vset.pattern.permute.xlu0 0
    %137 = vperm.xlu0 %136, %v42
    %v138 = vpop.permute.xlu0 %137
    %139 = vset.pattern.permute.xlu0 0
    %140 = vperm.xlu0 %139, %v43
    %v141 = vpop.permute.xlu0 %140
    %vm142 = vcmp.eq.s32.totalorder %v48, %v45
    %vm143 = vcmp.eq.s32.totalorder %v51, %v45
    %vm144 = vcmp.eq.s32.totalorder %v54, %v45
    %vm145 = vcmp.eq.s32.totalorder %v57, %v45
    %vm146 = vcmp.eq.s32.totalorder %v60, %v45
    %vm147 = vcmp.eq.s32.totalorder %v63, %v45
    %vm148 = vcmp.eq.s32.totalorder %v66, %v45
    %vm149 = vcmp.eq.s32.totalorder %v69, %v45
    %vm150 = vcmp.eq.s32.totalorder %v72, %v45
    %vm151 = vcmp.eq.s32.totalorder %v75, %v45
    %vm152 = vcmp.eq.s32.totalorder %v78, %v45
    %vm153 = vcmp.eq.s32.totalorder %v81, %v45
    %vm154 = vcmp.eq.s32.totalorder %v84, %v45
    %vm155 = vcmp.eq.s32.totalorder %v87, %v45
    %vm156 = vcmp.eq.s32.totalorder %v90, %v45
    %vm157 = vcmp.eq.s32.totalorder %v93, %v45
    %vm158 = vcmp.eq.s32.totalorder %v96, %v45
    %vm159 = vcmp.eq.s32.totalorder %v99, %v45
    %vm160 = vcmp.eq.s32.totalorder %v102, %v45
    %vm161 = vcmp.eq.s32.totalorder %v105, %v45
    %vm162 = vcmp.eq.s32.totalorder %v108, %v45
    %vm163 = vcmp.eq.s32.totalorder %v111, %v45
    %vm164 = vcmp.eq.s32.totalorder %v114, %v45
    %vm165 = vcmp.eq.s32.totalorder %v117, %v45
    %vm166 = vcmp.eq.s32.totalorder %v120, %v45
    %vm167 = vcmp.eq.s32.totalorder %v123, %v45
    %vm168 = vcmp.eq.s32.totalorder %v126, %v45
    %vm169 = vcmp.eq.s32.totalorder %v129, %v45
    %vm170 = vcmp.eq.s32.totalorder %v132, %v45
    %vm171 = vcmp.eq.s32.totalorder %v135, %v45
    %vm172 = vcmp.eq.s32.totalorder %v138, %v45
    %vm173 = vcmp.eq.s32.totalorder %v141, %v45
    %v174 = vsel %vm142, 1, 0
    %v175 = vsel %vm143, 1, 0
    %v176 = vsel %vm144, 1, 0
    %v177 = vsel %vm145, 1, 0
    %v178 = vsel %vm146, 1, 0
    %v179 = vsel %vm147, 1, 0
    %v180 = vsel %vm148, 1, 0
    %v181 = vsel %vm149, 1, 0
    %v182 = vsel %vm150, 1, 0
    %v183 = vsel %vm151, 1, 0
    %v184 = vsel %vm152, 1, 0
    %v185 = vsel %vm153, 1, 0
    %v186 = vsel %vm154, 1, 0
    %v187 = vsel %vm155, 1, 0
    %v188 = vsel %vm156, 1, 0
    %v189 = vsel %vm157, 1, 0
    %v190 = vsel %vm158, 1, 0
    %v191 = vsel %vm159, 1, 0
    %v192 = vsel %vm160, 1, 0
    %v193 = vsel %vm161, 1, 0
    %v194 = vsel %vm162, 1, 0
    %v195 = vsel %vm163, 1, 0
    %v196 = vsel %vm164, 1, 0
    %v197 = vsel %vm165, 1, 0
    %v198 = vsel %vm166, 1, 0
    %v199 = vsel %vm167, 1, 0
    %v200 = vsel %vm168, 1, 0
    %v201 = vsel %vm169, 1, 0
    %v202 = vsel %vm170, 1, 0
    %v203 = vsel %vm171, 1, 0
    %v204 = vsel %vm172, 1, 0
    %v205 = vsel %vm173, 1, 0
    %v206 = vcvt.s32.f32 %v174
    %v207 = vcvt.s32.f32 %v175
    %v208 = vcvt.s32.f32 %v176
    %v209 = vcvt.s32.f32 %v177
    %v210 = vcvt.s32.f32 %v178
    %v211 = vcvt.s32.f32 %v179
    %v212 = vcvt.s32.f32 %v180
    %v213 = vcvt.s32.f32 %v181
    %v214 = vcvt.s32.f32 %v182
    %v215 = vcvt.s32.f32 %v183
    %v216 = vcvt.s32.f32 %v184
    %v217 = vcvt.s32.f32 %v185
    %v218 = vcvt.s32.f32 %v186
    %v219 = vcvt.s32.f32 %v187
    %v220 = vcvt.s32.f32 %v188
    %v221 = vcvt.s32.f32 %v189
    %v222 = vcvt.s32.f32 %v190
    %v223 = vcvt.s32.f32 %v191
    %v224 = vcvt.s32.f32 %v192
    %v225 = vcvt.s32.f32 %v193
    %v226 = vcvt.s32.f32 %v194
    %v227 = vcvt.s32.f32 %v195
    %v228 = vcvt.s32.f32 %v196
    %v229 = vcvt.s32.f32 %v197
    %v230 = vcvt.s32.f32 %v198
    %v231 = vcvt.s32.f32 %v199
    %v232 = vcvt.s32.f32 %v200
    %v233 = vcvt.s32.f32 %v201
    %v234 = vcvt.s32.f32 %v202
    %v235 = vcvt.s32.f32 %v203
    %v236 = vcvt.s32.f32 %v204
    %v237 = vcvt.s32.f32 %v205
    %v238 = vld [vmem:[%s1] sm:$0xff]
    %v239 = vld [vmem:[%s1 + $0x8] sm:$0xff]
    %v240 = vld [vmem:[%s1 + $0x10] sm:$0xff]
    %v241 = vld [vmem:[%s1 + $0x18] sm:$0xff]
    %v242 = vld [vmem:[%s1 + $0x20] sm:$0xff]
    %v243 = vld [vmem:[%s1 + $0x28] sm:$0xff]
    %v244 = vld [vmem:[%s1 + $0x30] sm:$0xff]
    %v245 = vld [vmem:[%s1 + $0x38] sm:$0xff]
    %vm246 = vcmask 523264
    %v248 = vsel %vm246, %v206, 0
    %v251 = vsel %vm246, %v207, 0
    %v254 = vsel %vm246, %v208, 0
    %v257 = vsel %vm246, %v209, 0
    %v260 = vsel %vm246, %v210, 0
    %v263 = vsel %vm246, %v211, 0
    %v266 = vsel %vm246, %v212, 0
    %v269 = vsel %vm246, %v213, 0
    %v272 = vsel %vm246, %v214, 0
    %v275 = vsel %vm246, %v215, 0
    %v278 = vsel %vm246, %v216, 0
    %v281 = vsel %vm246, %v217, 0
    %v284 = vsel %vm246, %v218, 0
    %v287 = vsel %vm246, %v219, 0
    %v290 = vsel %vm246, %v220, 0
    %v293 = vsel %vm246, %v221, 0
    %v296 = vsel %vm246, %v222, 0
    %v299 = vsel %vm246, %v223, 0
    %v302 = vsel %vm246, %v224, 0
    %v305 = vsel %vm246, %v225, 0
    %v308 = vsel %vm246, %v226, 0
    %v311 = vsel %vm246, %v227, 0
    %v314 = vsel %vm246, %v228, 0
    %v317 = vsel %vm246, %v229, 0
    %v320 = vsel %vm246, %v230, 0
    %v323 = vsel %vm246, %v231, 0
    %v326 = vsel %vm246, %v232, 0
    %v329 = vsel %vm246, %v233, 0
    %v332 = vsel %vm246, %v234, 0
    %v335 = vsel %vm246, %v235, 0
    %v338 = vsel %vm246, %v236, 0
    %v341 = vsel %vm246, %v237, 0
    %343 = vmatprep.subr.mxu0 0.0
    %344 = vmatpush1.msra.mxu0 %v238
    %345 = vmatprep.subr.mxu0 0.0
    %346 = vmatpush1.msra.mxu0 %v239
    %347 = vmatprep.subr.mxu0 0.0
    %348 = vmatpush1.msra.mxu0 %v240
    %349 = vmatprep.subr.mxu0 0.0
    %350 = vmatpush1.msra.mxu0 %v241
    %351 = vmatprep.subr.mxu0 0.0
    %352 = vmatpush1.msra.mxu0 %v242
    %353 = vmatprep.subr.mxu0 0.0
    %354 = vmatpush1.msra.mxu0 %v243
    %355 = vmatprep.subr.mxu0 0.0
    %356 = vmatpush1.msra.mxu0 %v244
    %357 = vmatprep.subr.mxu0 0.0
    %358 = vmatpush1.msra.mxu0 %v245
    %359 = vmatprep.subr.mxu0 0.0
    %360 = vmatpush1.msra.mxu0 0.0
    %361 = vmatprep.subr.mxu0 0.0
    %362 = vmatpush1.msra.mxu0 0.0
    %363 = vmatprep.subr.mxu0 0.0
    %364 = vmatpush1.msra.mxu0 0.0
    %365 = vmatprep.subr.mxu0 0.0
    %366 = vmatpush1.msra.mxu0 0.0
    %367 = vmatprep.subr.mxu0 0.0
    %368 = vmatpush1.msra.mxu0 0.0
    %369 = vmatprep.subr.mxu0 0.0
    %370 = vmatpush1.msra.mxu0 0.0
    %371 = vmatprep.subr.mxu0 0.0
    %372 = vmatpush1.msra.mxu0 0.0
    %373 = vmatprep.subr.mxu0 0.0
    %374 = vmatpush1.msra.mxu0 0.0
    %375 = vmatprep.subr.mxu0 0.0
    %376 = vmatpush1.msra.mxu0 0.0
    %377 = vmatprep.subr.mxu0 0.0
    %378 = vmatpush1.msra.mxu0 0.0
    %379 = vmatprep.subr.mxu0 0.0
    %380 = vmatpush1.msra.mxu0 0.0
    %381 = vmatprep.subr.mxu0 0.0
    %382 = vmatpush1.msra.mxu0 0.0
    %383 = vmatprep.subr.mxu0 0.0
    %384 = vmatpush1.msra.mxu0 0.0
    %385 = vmatprep.subr.mxu0 0.0
    %386 = vmatpush1.msra.mxu0 0.0
    %387 = vmatprep.subr.mxu0 0.0
    %388 = vmatpush1.msra.mxu0 0.0
    %389 = vmatprep.subr.mxu0 0.0
    %390 = vmatpush1.msra.mxu0 0.0
    %391 = vmatprep.subr.mxu0 0.0
    %392 = vmatpush1.msra.mxu0 0.0
    %393 = vmatprep.subr.mxu0 0.0
    %394 = vmatpush1.msra.mxu0 0.0
    %395 = vmatprep.subr.mxu0 0.0
    %396 = vmatpush1.msra.mxu0 0.0
    %397 = vmatprep.subr.mxu0 0.0
    %398 = vmatpush1.msra.mxu0 0.0
    %399 = vmatprep.subr.mxu0 0.0
    %400 = vmatpush1.msra.mxu0 0.0
    %401 = vmatprep.subr.mxu0 0.0
    %402 = vmatpush1.msra.mxu0 0.0
    %403 = vmatprep.subr.mxu0 0.0
    %404 = vmatpush1.msra.mxu0 0.0
    %405 = vmatprep.subr.mxu0 0.0
    %406 = vmatpush1.msra.mxu0 0.0
    %407 = vmatprep.mubr.f32.mxu0 0.0
    %408 = vmatmul.mubr.f32.gmra.mrb[0].mxu0 %v248
    %v409 = vpop.f32.mrb[0].mxu0
    %v410 = vadd.f32 0.0, %v409
    %v411 = vpop.f32.mrb[0].mxu0
    %412 = vmatprep.mubr.f32.mxu0 0.0
    %413 = vmatmul.mubr.f32.gmra.mrb[0].mxu0 %v251
    %v414 = vpop.f32.mrb[0].mxu0
    %v415 = vadd.f32 0.0, %v414
    %v416 = vpop.f32.mrb[0].mxu0
    %417 = vmatprep.mubr.f32.mxu0 0.0
    %418 = vmatmul.mubr.f32.gmra.mrb[0].mxu0 %v254
    %v419 = vpop.f32.mrb[0].mxu0
    %v420 = vadd.f32 0.0, %v419
    %v421 = vpop.f32.mrb[0].mxu0
    %422 = vmatprep.mubr.f32.mxu0 0.0
    %423 = vmatmul.mubr.f32.gmra.mrb[0].mxu0 %v257
    %v424 = vpop.f32.mrb[0].mxu0
    %v425 = vadd.f32 0.0, %v424
    %v426 = vpop.f32.mrb[0].mxu0
    %427 = vmatprep.mubr.f32.mxu0 0.0
    %428 = vmatmul.mubr.f32.gmra.mrb[0].mxu0 %v260
    %v429 = vpop.f32.mrb[0].mxu0
    %v430 = vadd.f32 0.0, %v429
    %v431 = vpop.f32.mrb[0].mxu0
    %432 = vmatprep.mubr.f32.mxu0 0.0
    %433 = vmatmul.mubr.f32.gmra.mrb[0].mxu0 %v263
    %v434 = vpop.f32.mrb[0].mxu0
    %v435 = vadd.f32 0.0, %v434
    %v436 = vpop.f32.mrb[0].mxu0
    %437 = vmatprep.mubr.f32.mxu0 0.0
    %438 = vmatmul.mubr.f32.gmra.mrb[0].mxu0 %v266
    %v439 = vpop.f32.mrb[0].mxu0
    %v440 = vadd.f32 0.0, %v439
    %v441 = vpop.f32.mrb[0].mxu0
    %442 = vmatprep.mubr.f32.mxu0 0.0
    %443 = vmatmul.mubr.f32.gmra.mrb[0].mxu0 %v269
    %v444 = vpop.f32.mrb[0].mxu0
    %v445 = vadd.f32 0.0, %v444
    %v446 = vpop.f32.mrb[0].mxu0
    %447 = vmatprep.mubr.f32.mxu0 0.0
    %448 = vmatmul.mubr.f32.gmra.mrb[0].mxu0 %v272
    %v449 = vpop.f32.mrb[0].mxu0
    %v450 = vadd.f32 0.0, %v449
    %v451 = vpop.f32.mrb[0].mxu0
    %452 = vmatprep.mubr.f32.mxu0 0.0
    %453 = vmatmul.mubr.f32.gmra.mrb[0].mxu0 %v275
    %v454 = vpop.f32.mrb[0].mxu0
    %v455 = vadd.f32 0.0, %v454
    %v456 = vpop.f32.mrb[0].mxu0
    %457 = vmatprep.mubr.f32.mxu0 0.0
    %458 = vmatmul.mubr.f32.gmra.mrb[0].mxu0 %v278
    %v459 = vpop.f32.mrb[0].mxu0
    %v460 = vadd.f32 0.0, %v459
    %v461 = vpop.f32.mrb[0].mxu0
    %462 = vmatprep.mubr.f32.mxu0 0.0
    %463 = vmatmul.mubr.f32.gmra.mrb[0].mxu0 %v281
    %v464 = vpop.f32.mrb[0].mxu0
    %v465 = vadd.f32 0.0, %v464
    %v466 = vpop.f32.mrb[0].mxu0
    %467 = vmatprep.mubr.f32.mxu0 0.0
    %468 = vmatmul.mubr.f32.gmra.mrb[0].mxu0 %v284
    %v469 = vpop.f32.mrb[0].mxu0
    %v470 = vadd.f32 0.0, %v469
    %v471 = vpop.f32.mrb[0].mxu0
    %472 = vmatprep.mubr.f32.mxu0 0.0
    %473 = vmatmul.mubr.f32.gmra.mrb[0].mxu0 %v287
    %v474 = vpop.f32.mrb[0].mxu0
    %v475 = vadd.f32 0.0, %v474
    %v476 = vpop.f32.mrb[0].mxu0
    %477 = vmatprep.mubr.f32.mxu0 0.0
    %478 = vmatmul.mubr.f32.gmra.mrb[0].mxu0 %v290
    %v479 = vpop.f32.mrb[0].mxu0
    %v480 = vadd.f32 0.0, %v479
    %v481 = vpop.f32.mrb[0].mxu0
    %482 = vmatprep.mubr.f32.mxu0 0.0
    %483 = vmatmul.mubr.f32.gmra.mrb[0].mxu0 %v293
    %v484 = vpop.f32.mrb[0].mxu0
    %v485 = vadd.f32 0.0, %v484
    %v486 = vpop.f32.mrb[0].mxu0
    %487 = vmatprep.mubr.f32.mxu0 0.0
    %488 = vmatmul.mubr.f32.gmra.mrb[0].mxu0 %v296
    %v489 = vpop.f32.mrb[0].mxu0
    %v490 = vadd.f32 0.0, %v489
    %v491 = vpop.f32.mrb[0].mxu0
    %492 = vmatprep.mubr.f32.mxu0 0.0
    %493 = vmatmul.mubr.f32.gmra.mrb[0].mxu0 %v299
    %v494 = vpop.f32.mrb[0].mxu0
    %v495 = vadd.f32 0.0, %v494
    %v496 = vpop.f32.mrb[0].mxu0
    %497 = vmatprep.mubr.f32.mxu0 0.0
    %498 = vmatmul.mubr.f32.gmra.mrb[0].mxu0 %v302
    %v499 = vpop.f32.mrb[0].mxu0
    %v500 = vadd.f32 0.0, %v499
    %v501 = vpop.f32.mrb[0].mxu0
    %502 = vmatprep.mubr.f32.mxu0 0.0
    %503 = vmatmul.mubr.f32.gmra.mrb[0].mxu0 %v305
    %v504 = vpop.f32.mrb[0].mxu0
    %v505 = vadd.f32 0.0, %v504
    %v506 = vpop.f32.mrb[0].mxu0
    %507 = vmatprep.mubr.f32.mxu0 0.0
    %508 = vmatmul.mubr.f32.gmra.mrb[0].mxu0 %v308
    %v509 = vpop.f32.mrb[0].mxu0
    %v510 = vadd.f32 0.0, %v509
    %v511 = vpop.f32.mrb[0].mxu0
    %512 = vmatprep.mubr.f32.mxu0 0.0
    %513 = vmatmul.mubr.f32.gmra.mrb[0].mxu0 %v311
    %v514 = vpop.f32.mrb[0].mxu0
    %v515 = vadd.f32 0.0, %v514
    %v516 = vpop.f32.mrb[0].mxu0
    %517 = vmatprep.mubr.f32.mxu0 0.0
    %518 = vmatmul.mubr.f32.gmra.mrb[0].mxu0 %v314
    %v519 = vpop.f32.mrb[0].mxu0
    %v520 = vadd.f32 0.0, %v519
    %v521 = vpop.f32.mrb[0].mxu0
    %522 = vmatprep.mubr.f32.mxu0 0.0
    %523 = vmatmul.mubr.f32.gmra.mrb[0].mxu0 %v317
    %v524 = vpop.f32.mrb[0].mxu0
    %v525 = vadd.f32 0.0, %v524
    %v526 = vpop.f32.mrb[0].mxu0
    %527 = vmatprep.mubr.f32.mxu0 0.0
    %528 = vmatmul.mubr.f32.gmra.mrb[0].mxu0 %v320
    %v529 = vpop.f32.mrb[0].mxu0
    %v530 = vadd.f32 0.0, %v529
    %v531 = vpop.f32.mrb[0].mxu0
    %532 = vmatprep.mubr.f32.mxu0 0.0
    %533 = vmatmul.mubr.f32.gmra.mrb[0].mxu0 %v323
    %v534 = vpop.f32.mrb[0].mxu0
    %v535 = vadd.f32 0.0, %v534
    %v536 = vpop.f32.mrb[0].mxu0
    %537 = vmatprep.mubr.f32.mxu0 0.0
    %538 = vmatmul.mubr.f32.gmra.mrb[0].mxu0 %v326
    %v539 = vpop.f32.mrb[0].mxu0
    %v540 = vadd.f32 0.0, %v539
    %v541 = vpop.f32.mrb[0].mxu0
    %542 = vmatprep.mubr.f32.mxu0 0.0
    %543 = vmatmul.mubr.f32.gmra.mrb[0].mxu0 %v329
    %v544 = vpop.f32.mrb[0].mxu0
    %v545 = vadd.f32 0.0, %v544
    %v546 = vpop.f32.mrb[0].mxu0
    %547 = vmatprep.mubr.f32.mxu0 0.0
    %548 = vmatmul.mubr.f32.gmra.mrb[0].mxu0 %v332
    %v549 = vpop.f32.mrb[0].mxu0
    %v550 = vadd.f32 0.0, %v549
    %v551 = vpop.f32.mrb[0].mxu0
    %552 = vmatprep.mubr.f32.mxu0 0.0
    %553 = vmatmul.mubr.f32.gmra.mrb[0].mxu0 %v335
    %v554 = vpop.f32.mrb[0].mxu0
    %v555 = vadd.f32 0.0, %v554
    %v556 = vpop.f32.mrb[0].mxu0
    %557 = vmatprep.mubr.f32.mxu0 0.0
    %558 = vmatmul.mubr.f32.gmra.mrb[0].mxu0 %v338
    %v559 = vpop.f32.mrb[0].mxu0
    %v560 = vadd.f32 0.0, %v559
    %v561 = vpop.f32.mrb[0].mxu0
    %562 = vmatprep.mubr.f32.mxu0 0.0
    %563 = vmatmul.mubr.f32.gmra.mrb[0].mxu0 %v341
    %v564 = vpop.f32.mrb[0].mxu0
    %v565 = vadd.f32 0.0, %v564
    %v566 = vpop.f32.mrb[0].mxu0
    %567 = vdwg.mxu0
    %v568 = vmul.f32 %v410, 11.313708
    %v569 = vmul.f32 %v415, 11.313708
    %v570 = vmul.f32 %v420, 11.313708
    %v571 = vmul.f32 %v425, 11.313708
    %v572 = vmul.f32 %v430, 11.313708
    %v573 = vmul.f32 %v435, 11.313708
    %v574 = vmul.f32 %v440, 11.313708
    %v575 = vmul.f32 %v445, 11.313708
    %v576 = vmul.f32 %v450, 11.313708
    %v577 = vmul.f32 %v455, 11.313708
    %v578 = vmul.f32 %v460, 11.313708
    %v579 = vmul.f32 %v465, 11.313708
    %v580 = vmul.f32 %v470, 11.313708
    %v581 = vmul.f32 %v475, 11.313708
    %v582 = vmul.f32 %v480, 11.313708
    %v583 = vmul.f32 %v485, 11.313708
    %v584 = vmul.f32 %v490, 11.313708
    %v585 = vmul.f32 %v495, 11.313708
    %v586 = vmul.f32 %v500, 11.313708
    %v587 = vmul.f32 %v505, 11.313708
    %v588 = vmul.f32 %v510, 11.313708
    %v589 = vmul.f32 %v515, 11.313708
    %v590 = vmul.f32 %v520, 11.313708
    %v591 = vmul.f32 %v525, 11.313708
    %v592 = vmul.f32 %v530, 11.313708
    %v593 = vmul.f32 %v535, 11.313708
    %v594 = vmul.f32 %v540, 11.313708
    %v595 = vmul.f32 %v545, 11.313708
    %v596 = vmul.f32 %v550, 11.313708
    %v597 = vmul.f32 %v555, 11.313708
    %v598 = vmul.f32 %v560, 11.313708
    %v599 = vmul.f32 %v565, 11.313708
    %600 = vst [vmem:[#allocation2] sm:$0xff] %v568
    %601 = vst [vmem:[#allocation2 + $0x8] sm:$0xff] %v569
    %602 = vst [vmem:[#allocation2 + $0x10] sm:$0xff] %v570
    %603 = vst [vmem:[#allocation2 + $0x18] sm:$0xff] %v571
    %604 = vst [vmem:[#allocation2 + $0x20] sm:$0xff] %v572
    %605 = vst [vmem:[#allocation2 + $0x28] sm:$0xff] %v573
    %606 = vst [vmem:[#allocation2 + $0x30] sm:$0xff] %v574
    %607 = vst [vmem:[#allocation2 + $0x38] sm:$0xff] %v575
    %608 = vst [vmem:[#allocation2 + $0x40] sm:$0xff] %v576
    %609 = vst [vmem:[#allocation2 + $0x48] sm:$0xff] %v577
    %610 = vst [vmem:[#allocation2 + $0x50] sm:$0xff] %v578
    %611 = vst [vmem:[#allocation2 + $0x58] sm:$0xff] %v579
    %612 = vst [vmem:[#allocation2 + $0x60] sm:$0xff] %v580
    %613 = vst [vmem:[#allocation2 + $0x68] sm:$0xff] %v581
    %614 = vst [vmem:[#allocation2 + $0x70] sm:$0xff] %v582
    %615 = vst [vmem:[#allocation2 + $0x78] sm:$0xff] %v583
    %616 = vst [vmem:[#allocation2 + $0x80] sm:$0xff] %v584
    %617 = vst [vmem:[#allocation2 + $0x88] sm:$0xff] %v585
    %618 = vst [vmem:[#allocation2 + $0x90] sm:$0xff] %v586
    %619 = vst [vmem:[#allocation2 + $0x98] sm:$0xff] %v587
    %620 = vst [vmem:[#allocation2 + $0xa0] sm:$0xff] %v588
    %621 = vst [vmem:[#allocation2 + $0xa8] sm:$0xff] %v589
    %622 = vst [vmem:[#allocation2 + $0xb0] sm:$0xff] %v590
    %623 = vst [vmem:[#allocation2 + $0xb8] sm:$0xff] %v591
    %624 = vst [vmem:[#allocation2 + $0xc0] sm:$0xff] %v592
    %625 = vst [vmem:[#allocation2 + $0xc8] sm:$0xff] %v593
    %626 = vst [vmem:[#allocation2 + $0xd0] sm:$0xff] %v594
    %627 = vst [vmem:[#allocation2 + $0xd8] sm:$0xff] %v595
    %628 = vst [vmem:[#allocation2 + $0xe0] sm:$0xff] %v596
    %629 = vst [vmem:[#allocation2 + $0xe8] sm:$0xff] %v597
    %630 = vst [vmem:[#allocation2 + $0xf0] sm:$0xff] %v598
    %631 = vst [vmem:[#allocation2 + $0xf8] sm:$0xff] %v599
    // Predicated region
    $region10: #{tpu_custom_call.1} parent=1 // pred_check
      _
    $region11: #{tpu_custom_call.1} parent=1 // pred_check_branch
      %633 = sbr.rel (0) target = $region13
    $region12: #{tpu_custom_call.1} parent=1 // pred_region
      %s635 = ssub.s32 4096, 4096
      %636 = vsyncadd [#allocation3], %s635
      %s637 = sshll.u32 [#allocation2], 4
      %s638 = int_to_ptr.vmem [resolvable:$true] %s637
      %643 = dma.vmem_to_hbm [thread:$0]  %s638, 4096, %s2, [#allocation3], 128, 128, 8
    $region13: #{tpu_custom_call.1} parent=1 // pred_fallthru
      _
    // Predicated region
    $region14: #{tpu_custom_call.1} parent=1 // pred_check
      _
    $region15: #{tpu_custom_call.1} parent=1 // pred_check_branch
      %645 = sbr.rel (0) target = $region17
    $region16: #{tpu_custom_call.1} parent=1 // pred_region
      %646 = dma.done [#allocation3], 4096
    $region17: #{tpu_custom_call.1} parent=1 // pred_fallthru
      _
    %647 = vsyncpa [#allocation3], 1

</llo_original>
